<compile_context>
chip_gen: v6e
topology: v6e:2x2x1
jax: 0.10.0
libtpu: 0.0.40
codegen_flags: <defaults>
</compile_context>

<pallas_src>
import functools

import jax
import jax.numpy as jnp
from jax.experimental import pallas as pl
from jax.experimental.pallas import tpu as pltpu


# ------------------------------ hardware plan --------------------------------

def _hw_plan():
    """Generation-keyed VMEM budgets.

    Returns (vmem_limit_bytes, fused_block_cap, stream_block_cap).
    """
    vmem_phys = 64 * 1024 * 1024              # conservative default (v7x-class)
    try:
        vmem_phys = int(pltpu.get_tpu_info().vmem_capacity_bytes)
    except Exception:                          # query unavailable -> keep default
        pass
    is_v7x = False
    try:
        kind = jax.devices()[0].device_kind.lower()
        is_v7x = ("v7" in kind) or ("7x" in kind)
    except Exception:
        pass
    if is_v7x or vmem_phys <= 64 * 1024 * 1024:
        # v7x: scoped limit == physical capacity; leave headroom for compiler
        # scratch and pipeline buffers.
        vmem_limit = 48 * 1024 * 1024
    else:
        # v5e / v6e: 128 MiB physical; a generous scoped limit lets us use
        # larger tiles (fewer grid steps -> closer to the HBM roofline).
        vmem_limit = 96 * 1024 * 1024
    fused_cap = vmem_limit // 5    # x-block cap, fused 1-pass (2x in + 2x out + slack)
    stream_cap = vmem_limit // 12  # x-block cap, streaming 2-pass fallback
    return vmem_limit, fused_cap, stream_cap


def _largest_divisor(n, cap):
    """Largest divisor of n that is <= cap (at least 1)."""
    d = max(1, min(n, cap))
    while n % d != 0:
        d -= 1
    return d


def _spatial_tile(hwp, max_elems):
    """Largest multiple of 128 dividing hwp (itself a multiple of 128), <= max_elems."""
    t = min(hwp, max(128, (max_elems // 128) * 128))
    while t > 128 and hwp % t != 0:
        t -= 128
    return t


# ------------------------------- excitation -----------------------------------

def _excite(y, w1t, w2):
    """sigmoid(relu(y @ W1.T) @ W2.T), keeping per-(sample, channel) scalars on
    the sublane axis throughout (no cross-layout reshapes inside the kernel).

      y   : (n, C, 1) f32 channel means (C on sublanes)
      w1t : (C, Cr)   = W1.T
      w2  : (C, Cr)   = W2
    returns (n, C, 1) f32 gate.
    """
    w1t = w1t.astype(jnp.float32)
    w2 = w2.astype(jnp.float32)
    c, cr = w1t.shape
    if c * cr <= 256 * 256:
        # Tiny FCs: broadcast-multiply + keepdims reductions (VPU/XLU only).
        h = jnp.sum(y * w1t[None, :, :], axis=1, keepdims=True)        # (n, 1, Cr)
        h = jnp.maximum(h, 0.0)
        s = jnp.sum(h * w2[None, :, :], axis=-1, keepdims=True)        # (n, C, 1)
    else:
        # Large-channel SE blocks: use the MXU for the contractions.
        y2 = y[:, :, 0]                                                 # (n, C)
        h = jax.lax.dot_general(y2, w1t, (((1,), (0,)), ((), ())),
                                preferred_element_type=jnp.float32)     # (n, Cr)
        h = jnp.maximum(h, 0.0)
        s = jax.lax.dot_general(h, w2, (((1,), (1,)), ((), ())),
                                preferred_element_type=jnp.float32)     # (n, C)
        s = s[:, :, None]
    return 1.0 / (1.0 + jnp.exp(-s))                                    # sigmoid


# --------------------------------- kernels -------------------------------------

def _make_fused_kernel(inv_hw):
    """Single pass: pool -> FCs -> sigmoid -> scale on a VMEM-resident block."""
    def kernel(x_ref, w1t_ref, w2_ref, o_ref):
        x = x_ref[...]                                                  # (bb, C, HW)
        y = jnp.sum(x, axis=-1, keepdims=True, dtype=jnp.float32) * inv_hw
        g = _excite(y, w1t_ref[...], w2_ref[...])                       # (bb, C, 1) f32
        # Deliberate: gate cast to the activation dtype (avoids an f32 copy of
        # the whole block; exact for f32 activations).
        o_ref[...] = x * g.astype(x.dtype)
    return kernel


def _make_pool_excite_kernel(inv_hw):
    """Fallback pass 1: accumulate spatial sums in the resident output block and
    compute the gate in the epilogue of the last spatial tile (fused FCs)."""
    def kernel(x_ref, w1t_ref, w2_ref, g_ref):
        j = pl.program_id(1)

        @pl.when(j == 0)
        def _init():
            g_ref[...] = jnp.zeros_like(g_ref)

        g_ref[...] += jnp.sum(x_ref[...], axis=-1, keepdims=True,
                              dtype=jnp.float32)                        # (bb, C, 1)

        @pl.when(j == pl.num_programs(1) - 1)
        def _finalize():
            g_ref[...] = _excite(g_ref[...] * inv_hw, w1t_ref[...], w2_ref[...])
    return kernel


def _scale_kernel(x_ref, g_ref, o_ref):
    """Fallback pass 2: broadcast the per-(batch, channel) gate over spatial."""
    o_ref[...] = x_ref[...] * g_ref[...].astype(o_ref.dtype)


# --------------------------------- wrapper --------------------------------------

@functools.partial(jax.jit, static_argnames=("_max_fused_block_bytes",))
def qse_layer(x, w1, w2, *, _max_fused_block_bytes=None):
    """x: (B, C, H, W) NCHW; w1: (Cr, C); w2: (C, Cr). Returns (B, C, H, W)."""
    B, C, H, W = x.shape
    Cr = w1.shape[0]
    HW = H * W
    itemsize = jnp.dtype(x.dtype).itemsize
    inv_hw = 1.0 / float(HW)

    vmem_limit, fused_cap, stream_cap = _hw_plan()
    if _max_fused_block_bytes is not None:      # test hook: force the fallback
        fused_cap = _max_fused_block_bytes

    x3 = x.reshape(B, C, HW)                    # spatial on lanes, channels on sublanes
    w1t = jnp.transpose(w1)                     # (C, Cr): aligns the first contraction
                                                # with the sublane-resident means

    slab = C * HW * itemsize                    # one batch element's (C, HW) block
    if slab <= fused_cap:
        # ---- fused single pass: x read once from HBM, written once ----------
        bb = _largest_divisor(B, max(1, fused_cap // slab))
        if B >= 2:                              # >= 2 grid steps for v7x megacore
            bb = _largest_divisor(B, max(1, min(bb, B // 2)))
        out3 = pl.pallas_call(
            _make_fused_kernel(inv_hw),
            out_shape=jax.ShapeDtypeStruct((B, C, HW), x.dtype),
            grid_spec=pltpu.PrefetchScalarGridSpec(
                num_scalar_prefetch=0,
                grid=(B // bb,),
                in_specs=[pl.BlockSpec((bb, C, HW), lambda i: (i, 0, 0)),
                          pl.BlockSpec((C, Cr), lambda i: (0, 0)),
                          pl.BlockSpec((C, Cr), lambda i: (0, 0))],
                out_specs=pl.BlockSpec((bb, C, HW), lambda i: (i, 0, 0)),
            ),
            compiler_params=pltpu.CompilerParams(
                dimension_semantics=("parallel",),
                vmem_limit_bytes=vmem_limit),
        )(x3, w1t, w2)
        return out3.reshape(B, C, H, W)

    # ---- two-pass fallback: the (C, HW) slab does not fit in VMEM ------------
    # Zero-pad spatial to a multiple of 128 so every tile is lane-dense; the
    # zeros do not change the pooled sums and padded outputs are sliced off.
    HWp = ((HW + 127) // 128) * 128
    if HWp != HW:
        x3 = jnp.pad(x3, ((0, 0), (0, 0), (0, HWp - HW)))
    thw = _spatial_tile(HWp, stream_cap // max(1, C * itemsize))
    bb = _largest_divisor(B, max(1, stream_cap // (C * thw * itemsize)))
    if B >= 2:                                  # >= 2 batch tiles for v7x megacore
        bb = _largest_divisor(B, max(1, min(bb, B // 2)))
    grid = (B // bb, HWp // thw)

    # Pass 1: pooled sums -> gate, excitation fused in the epilogue.
    gate = pl.pallas_call(
        _make_pool_excite_kernel(inv_hw),
        out_shape=jax.ShapeDtypeStruct((B, C, 1), jnp.float32),
        grid_spec=pltpu.PrefetchScalarGridSpec(
            num_scalar_prefetch=0,
            grid=grid,
            in_specs=[pl.BlockSpec((bb, C, thw), lambda i, j: (i, 0, j)),
                      pl.BlockSpec((C, Cr), lambda i, j: (0, 0)),
                      pl.BlockSpec((C, Cr), lambda i, j: (0, 0))],
            out_specs=pl.BlockSpec((bb, C, 1), lambda i, j: (i, 0, 0)),
        ),
        compiler_params=pltpu.CompilerParams(
            dimension_semantics=("parallel", "arbitrary"),
            vmem_limit_bytes=vmem_limit),
    )(x3, w1t, w2)

    # Pass 2: stream x again and scale with the per-row gate.
    out3 = pl.pallas_call(
        _scale_kernel,
        out_shape=jax.ShapeDtypeStruct((B, C, HWp), x.dtype),
        grid_spec=pltpu.PrefetchScalarGridSpec(
            num_scalar_prefetch=0,
            grid=grid,
            in_specs=[pl.BlockSpec((bb, C, thw), lambda i, j: (i, 0, j)),
                      pl.BlockSpec((bb, C, 1), lambda i, j: (i, 0, 0))],
            out_specs=pl.BlockSpec((bb, C, thw), lambda i, j: (i, 0, j)),
        ),
        compiler_params=pltpu.CompilerParams(
            dimension_semantics=("parallel", "parallel"),
            vmem_limit_bytes=vmem_limit),
        # input_output_aliases={0: 0} would reuse x's HBM buffer if donated.
    )(x3, gate)

    if HWp != HW:
        out3 = out3[:, :, :HW]
    return out3.reshape(B, C, H, W)


# -------------------------------- reference -------------------------------------

def _reference(x, w1, w2):
    """Pure-JAX reference mirroring the PyTorch forward."""
    y = jnp.mean(x, axis=(2, 3))                    # (B, C)
    h = jnp.maximum(y @ w1.T, 0.0)                  # (B, Cr)
    s = jax.nn.sigmoid(h @ w2.T)                    # (B, C)
    return x * s[:, :, None, None]


if __name__ == "__main__":
    # QSELayer(channel=4, reduction=4) -> reduction forced to 1, hidden = channel
    B, C, H, W = 2, 4, 16, 16
    reduction = 1
    Cr = C // reduction

    key = jax.random.PRNGKey(0)
    kx, k1, k2 = jax.random.split(key, 3)
    x = jax.random.normal(kx, (B, C, H, W), dtype=jnp.float32)
    # deterministic synthetic weights (kaiming-uniform-ish scale)
    w1 = jax.random.uniform(k1, (Cr, C), jnp.float32, -1.0, 1.0) / jnp.sqrt(C)
    w2 = jax.random.uniform(k2, (C, Cr), jnp.float32, -1.0, 1.0) / jnp.sqrt(Cr)

    ref = _reference(x, w1, w2)

    # Common case: fully-fused single-pass kernel.
    out = jax.block_until_ready(qse_layer(x, w1, w2))
    assert out.shape == (B, C, H, W)
    assert jnp.allclose(out, ref, atol=1e-5, rtol=1e-5)

    # Also exercise the streaming two-pass fallback (forced via the test hook).
    out_fb = jax.block_until_ready(qse_layer(x, w1, w2, _max_fused_block_bytes=0))
    assert jnp.allclose(out_fb, ref, atol=1e-5, rtol=1e-5)

    print("KERNEL_OK")
</pallas_src>

<mosaic_0001>
module attributes {stable_mosaic.version = 11 : i64} {
  func.func @kernel(%arg0: i32, %arg1: memref<1x4x256xf32, #tpu.memory_space<vmem>>, %arg2: memref<4x4xf32, #tpu.memory_space<vmem>>, %arg3: memref<4x4xf32, #tpu.memory_space<vmem>>, %arg4: memref<1x4x256xf32, #tpu.memory_space<vmem>>) attributes {dimension_semantics = [#tpu.dimension_semantics<parallel>], iteration_bounds = array<i64: 2>, scalar_prefetch = 0 : i64, scratch_operands = 0 : i64, tpu.core_type = #tpu.core_type<tc>, window_params = [{transform_indices = @transform_0, window_bounds = array<i64: 1, 4, 256>}, {pipeline_mode = #tpu.pipeline_mode<synchronous>, transform_indices = @transform_1, window_bounds = array<i64: 4, 4>}, {pipeline_mode = #tpu.pipeline_mode<synchronous>, transform_indices = @transform_2, window_bounds = array<i64: 4, 4>}, {transform_indices = @transform_3, window_bounds = array<i64: 1, 4, 256>}]} {
    %c0 = arith.constant 0 : index
    %c0_0 = arith.constant 0 : index
    %c0_1 = arith.constant 0 : index
    %0 = vector.load %arg1[%c0, %c0_0, %c0_1] : memref<1x4x256xf32, #tpu.memory_space<vmem>>, vector<1x4x256xf32>
    %cst = arith.constant dense<0.000000e+00> : vector<1x4xf32>
    %1 = vector.multi_reduction <add>, %0, %cst [2] : vector<1x4x256xf32> to vector<1x4xf32>
    %2 = vector.shape_cast %1 : vector<1x4xf32> to vector<1x4x1xf32>
    %cst_2 = arith.constant 3.906250e-03 : f32
    %3 = vector.broadcast %cst_2 : f32 to vector<1x4x1xf32>
    %4 = arith.mulf %2, %3 : vector<1x4x1xf32>
    %c0_3 = arith.constant 0 : index
    %c0_4 = arith.constant 0 : index
    %5 = vector.load %arg2[%c0_3, %c0_4] : memref<4x4xf32, #tpu.memory_space<vmem>>, vector<4x4xf32>
    %c0_5 = arith.constant 0 : index
    %c0_6 = arith.constant 0 : index
    %6 = vector.load %arg3[%c0_5, %c0_6] : memref<4x4xf32, #tpu.memory_space<vmem>>, vector<4x4xf32>
    %7 = vector.shape_cast %5 : vector<4x4xf32> to vector<1x4x4xf32>
    %8 = vector.broadcast %4 : vector<1x4x1xf32> to vector<1x4x4xf32>
    %9 = arith.mulf %8, %7 : vector<1x4x4xf32>
    %cst_7 = arith.constant dense<0.000000e+00> : vector<1x4xf32>
    %10 = vector.multi_reduction <add>, %9, %cst_7 [1] : vector<1x4x4xf32> to vector<1x4xf32>
    %11 = vector.shape_cast %10 : vector<1x4xf32> to vector<1x1x4xf32>
    %cst_8 = arith.constant 0.000000e+00 : f32
    %12 = vector.broadcast %cst_8 : f32 to vector<1x1x4xf32>
    %13 = arith.maximumf %11, %12 : vector<1x1x4xf32>
    %14 = vector.shape_cast %6 : vector<4x4xf32> to vector<1x4x4xf32>
    %15 = vector.broadcast %13 : vector<1x1x4xf32> to vector<1x4x4xf32>
    %16 = arith.mulf %15, %14 : vector<1x4x4xf32>
    %cst_9 = arith.constant dense<0.000000e+00> : vector<1x4xf32>
    %17 = vector.multi_reduction <add>, %16, %cst_9 [2] : vector<1x4x4xf32> to vector<1x4xf32>
    %18 = vector.shape_cast %17 : vector<1x4xf32> to vector<1x4x1xf32>
    %cst_10 = arith.constant 0.000000e+00 : f32
    %19 = vector.broadcast %cst_10 : f32 to vector<1x4x1xf32>
    %20 = arith.subf %19, %18 : vector<1x4x1xf32>
    %21 = math.exp %20 : vector<1x4x1xf32>
    %cst_11 = arith.constant 1.000000e+00 : f32
    %22 = vector.broadcast %cst_11 : f32 to vector<1x4x1xf32>
    %23 = arith.addf %22, %21 : vector<1x4x1xf32>
    %cst_12 = arith.constant 1.000000e+00 : f32
    %24 = vector.broadcast %cst_12 : f32 to vector<1x4x1xf32>
    %25 = arith.divf %24, %23 : vector<1x4x1xf32>
    %26 = vector.broadcast %25 : vector<1x4x1xf32> to vector<1x4x256xf32>
    %27 = arith.mulf %0, %26 : vector<1x4x256xf32>
    %c0_13 = arith.constant 0 : index
    %c0_14 = arith.constant 0 : index
    %c0_15 = arith.constant 0 : index
    %28 = vector.load %arg4[%c0_13, %c0_14, %c0_15] : memref<1x4x256xf32, #tpu.memory_space<vmem>>, vector<1x4x256xf32>
    tpu.vector_store %arg4[%c0_13, %c0_14, %c0_15], %27 {strides = array<i32>} : memref<1x4x256xf32, #tpu.memory_space<vmem>>, vector<1x4x256xf32>,
    return
  }
  func.func @transform_0(%arg0: i32) -> (i32, i32, i32) {
    %c0_i32 = arith.constant 0 : i32
    %c0_i32_0 = arith.constant 0 : i32
    %c0_i32_1 = arith.constant 0 : i32
    return %arg0, %c0_i32, %c0_i32_0 : i32, i32, i32
  }
  func.func @transform_1(%arg0: i32) -> (i32, i32) {
    %c0_i32 = arith.constant 0 : i32
    %c0_i32_0 = arith.constant 0 : i32
    %c0_i32_1 = arith.constant 0 : i32
    return %c0_i32, %c0_i32_0 : i32, i32
  }
  func.func @transform_2(%arg0: i32) -> (i32, i32) {
    %c0_i32 = arith.constant 0 : i32
    %c0_i32_0 = arith.constant 0 : i32
    %c0_i32_1 = arith.constant 0 : i32
    return %c0_i32, %c0_i32_0 : i32, i32
  }
  func.func @transform_3(%arg0: i32) -> (i32, i32, i32) {
    %c0_i32 = arith.constant 0 : i32
    %c0_i32_0 = arith.constant 0 : i32
    %c0_i32_1 = arith.constant 0 : i32
    return %arg0, %c0_i32, %c0_i32_0 : i32, i32, i32
  }
}

</mosaic_0001>

<llo_original>
// kernel: qse_layer.1
$region0: #{qse_layer.1}
  #allocation0 [shape = 'u32[]', space=smem, size = 0x4, offset = 0x4, fixed_abs, tag = 'smem constant byte address 0x4 - core index']
  #allocation1 [shape = 'u32[144,128]{1,0:T(1,128)}', space=vmem, size = 0x12000, scoped, tag = 'internal scratch']
  %s0 = inlined_call_operand.vmem [shape: f32[2,4,256], index: 0, kind: input, shape index: {}]
  %s1 = inlined_call_operand.vmem [shape: f32[4,4], index: 1, kind: input, shape index: {}]
  %s2 = inlined_call_operand.vmem [shape: f32[4,4], index: 2, kind: input, shape index: {}]
  %s3 = inlined_call_operand.vmem [shape: f32[2,4,256], index: 3, kind: output, shape index: {}]
  %s4 = sld [smem:[#allocation0]]
  $region45: #{qse_layer.1} parent=0
    _
  %s6 = ssub.s32 1, %s4
  %s7 = scalar_select 0, %s6, %s4
  loop: start=0, step=1, limit=4
  $region2: #{qse_layer.1} parent=0 // loop_pre_header
    _
  $region3: #{qse_layer.1} parent=0 // loop_header
    %s9 = sphi 0, %s13
    %p10 = scmp.ge.s32.totalorder %s9, 4
    %s19 = sphi 0, %s21
    %s22 = sphi 0, %s19
    %s23 = sphi 0, %s22
    %s39 = sphi 0, %s23
    %s43 = sphi 0, %s43
    %s45 = sphi 0, %s43
    %s46 = sphi 0, %s45
    %s60 = sphi 0, %s46
    %s64 = sphi 0, %s64
    %s66 = sphi 0, %s64
    %s67 = sphi 0, %s66
    %s81 = sphi 0, %s67
    %s87 = sphi 0, %s89
    %s90 = sphi 0, %s87
    %s91 = sphi 0, %s90
    %s107 = sphi 0, %s91
  $region4: #{qse_layer.1} parent=0 // loop_header_branch
    %12 = sbr.rel (%p10) target = $region8
  $region5: #{qse_layer.1} parent=0 // loop_body
    %s14 = ssub.s32 %s9, 1
    %s15 = ssub.s32 %s9, 2
    %s16 = sadd.s32 %s9, 1
    %s17 = ssub.s32 %s9, %s16
    %p18 = scmp.eq.s32.totalorder %s17, 0
    %s20 = sadd.s32 %s19, 1
    %s21 = scalar_select %p18, %s19, %s20
    %p24 = pneg %p18
    %p25 = scmp.eq.s32.totalorder %s9, 1
    %p26 = por %p24, %p25
    %p27 = scmp.ne.s32.totalorder %s19, %s22
    %p28 = scmp.eq.s32.totalorder %s9, 0
    %p29 = por %p27, %p28
    %p30 = scmp.ne.s32.totalorder %s19, %s22
    %p31 = scmp.eq.s32.totalorder %s14, 1
    %p32 = por %p30, %p31
    %p33 = scmp.ne.s32.totalorder %s22, %s23
    %p34 = scmp.eq.s32.totalorder %s14, 0
    %p35 = por %p33, %p34
    %p36 = scmp.ne.s32.totalorder %s22, %s23
    %p37 = scmp.eq.s32.totalorder %s15, 1
    %p38 = por %p36, %p37
    %p40 = scmp.ne.s32.totalorder %s23, %s39
    %p41 = scmp.eq.s32.totalorder %s15, 0
    %p42 = por %p40, %p41
    %s44 = sadd.s32 %s43, 1
    %p47 = scmp.eq.s32.totalorder %s9, 1
    %p48 = scmp.ne.s32.totalorder %s43, %s45
    %p49 = scmp.eq.s32.totalorder %s9, 0
    %p50 = por %p48, %p49
    %p51 = scmp.ne.s32.totalorder %s43, %s45
    %p52 = scmp.eq.s32.totalorder %s14, 1
    %p53 = por %p51, %p52
    %p54 = scmp.ne.s32.totalorder %s45, %s46
    %p55 = scmp.eq.s32.totalorder %s14, 0
    %p56 = por %p54, %p55
    %p57 = scmp.ne.s32.totalorder %s45, %s46
    %p58 = scmp.eq.s32.totalorder %s15, 1
    %p59 = por %p57, %p58
    %p61 = scmp.ne.s32.totalorder %s46, %s60
    %p62 = scmp.eq.s32.totalorder %s15, 0
    %p63 = por %p61, %p62
    %s65 = sadd.s32 %s64, 1
    %p68 = scmp.eq.s32.totalorder %s9, 1
    %p69 = scmp.ne.s32.totalorder %s64, %s66
    %p70 = scmp.eq.s32.totalorder %s9, 0
    %p71 = por %p69, %p70
    %p72 = scmp.ne.s32.totalorder %s64, %s66
    %p73 = scmp.eq.s32.totalorder %s14, 1
    %p74 = por %p72, %p73
    %p75 = scmp.ne.s32.totalorder %s66, %s67
    %p76 = scmp.eq.s32.totalorder %s14, 0
    %p77 = por %p75, %p76
    %p78 = scmp.ne.s32.totalorder %s66, %s67
    %p79 = scmp.eq.s32.totalorder %s15, 1
    %p80 = por %p78, %p79
    %p82 = scmp.ne.s32.totalorder %s67, %s81
    %p83 = scmp.eq.s32.totalorder %s15, 0
    %p84 = por %p82, %p83
    %s85 = ssub.s32 %s9, %s16
    %p86 = scmp.eq.s32.totalorder %s85, 0
    %s88 = sadd.s32 %s87, 1
    %s89 = scalar_select %p86, %s87, %s88
    %p92 = pneg %p86
    %p93 = scmp.eq.s32.totalorder %s9, 1
    %p94 = por %p92, %p93
    %p95 = scmp.ne.s32.totalorder %s87, %s90
    %p96 = scmp.eq.s32.totalorder %s9, 0
    %p97 = por %p95, %p96
    %p98 = scmp.ne.s32.totalorder %s87, %s90
    %p99 = scmp.eq.s32.totalorder %s14, 1
    %p100 = por %p98, %p99
    %p101 = scmp.ne.s32.totalorder %s90, %s91
    %p102 = scmp.eq.s32.totalorder %s14, 0
    %p103 = por %p101, %p102
    %p104 = scmp.ne.s32.totalorder %s90, %s91
    %p105 = scmp.eq.s32.totalorder %s15, 1
    %p106 = por %p104, %p105
    %p108 = scmp.ne.s32.totalorder %s91, %s107
    %p109 = scmp.eq.s32.totalorder %s15, 0
    %p110 = por %p108, %p109
    %p111 = scmp.le.s32.totalorder 1, %s9
    %p112 = scmp.lt.s32.totalorder %s9, 3
    %p113 = pnand %p111, %p112
    %p114 = pneg %p113
    // Predicated region
    $region9: #{qse_layer.1} parent=5 // pred_check
      _
    $region10: #{qse_layer.1} parent=5 // pred_check_branch
      %116 = sbr.rel (%p113) target = $region12
    $region11: #{qse_layer.1} parent=5 // pred_region
      %s117 = ssub.s32 %s9, 1
      // Predicated region
      $region13: #{qse_layer.1} parent=11 // pred_check
        %p118 = pneg %p56
      $region14: #{qse_layer.1} parent=11 // pred_check_branch
        %120 = sbr.rel (%p118) target = $region16
      $region15: #{qse_layer.1} parent=11 // pred_region
        _
      $region16: #{qse_layer.1} parent=11 // pred_fallthru
        _
      // Predicated region
      $region17: #{qse_layer.1} parent=11 // pred_check
        %p121 = pneg %p77
      $region18: #{qse_layer.1} parent=11 // pred_check_branch
        %123 = sbr.rel (%p121) target = $region20
      $region19: #{qse_layer.1} parent=11 // pred_region
        _
      $region20: #{qse_layer.1} parent=11 // pred_fallthru
        _
    $region12: #{qse_layer.1} parent=5 // pred_fallthru
      _
    %p124 = scmp.lt.s32.totalorder %s9, 2
    // Predicated region
    $region21: #{qse_layer.1} parent=5 // pred_check
      %p125 = pneg %p124
    $region22: #{qse_layer.1} parent=5 // pred_check_branch
      %127 = sbr.rel (%p125) target = $region24
    $region23: #{qse_layer.1} parent=5 // pred_region
      // Predicated region
      $region25: #{qse_layer.1} parent=23 // pred_check
        %p128 = pneg %p29
      $region26: #{qse_layer.1} parent=23 // pred_check_branch
        %130 = sbr.rel (%p128) target = $region28
      $region27: #{qse_layer.1} parent=23 // pred_region
        %p131 = scmp.lt.s32.totalorder %s9, 1
        %s132 = scalar_select %p131, %s9, 1
        %s133 = smul.addr %s132, 2
        %s134 = smul.addr %s133, 4
        %s135 = scalar_lea.vmem %s0, %s134
      $region28: #{qse_layer.1} parent=23 // pred_fallthru
        _
    $region24: #{qse_layer.1} parent=5 // pred_fallthru
      _
    %p136 = scmp.le.s32.totalorder 1, %s9
    %p137 = scmp.lt.s32.totalorder %s9, 3
    %p138 = pnand %p136, %p137
    %p139 = pneg %p138
    // Predicated region
    $region29: #{qse_layer.1} parent=5 // pred_check
      _
    $region30: #{qse_layer.1} parent=5 // pred_check_branch
      %141 = sbr.rel (%p138) target = $region32
    $region31: #{qse_layer.1} parent=5 // pred_region
      %s142 = ssub.s32 %s9, 1
      %p143 = scmp.lt.s32.totalorder %s14, 1
      %s144 = scalar_select %p143, %s14, 1
      %s145 = smul.addr %s144, 2
      %s146 = smul.addr %s145, 4
      %s147 = scalar_lea.vmem %s0, %s146
      %p148 = pneg %p35
      %p149 = pneg %p32
      %p150 = pneg %p56
      %p151 = pneg %p53
      %p152 = pneg %p77
      %p153 = pneg %p74
      %p154 = pneg %p103
      %p155 = pneg %p100
      %p156 = scmp.lt.s32.totalorder %s14, 1
      %s157 = scalar_select %p156, %s14, 1
      %s158 = smul.addr %s157, 2
      %s159 = smul.addr %s158, 4
      %s160 = scalar_lea.vmem %s3, %s159
      %p161 = scmp.lt.s32.totalorder %s14, 1
      %s162 = scalar_select %p161, %s14, 1
      %s163 = smul.addr %s162, 2
      %s164 = smul.addr %s163, 4
      %s165 = scalar_lea.vmem %s0, %s164
      %p166 = scmp.lt.s32.totalorder %s14, 1
      %s167 = scalar_select %p166, %s14, 1
      %s168 = smul.addr %s167, 2
      %s169 = smul.addr %s168, 4
      %s170 = scalar_lea.vmem %s3, %s169
      %v171 = vld [vmem:[%s165] sm:$0xff]
      %v173 = vcombine.high %v171, %v171
      %vm175 = vcmask 1043456
      %v176 = vsel %vm175, %v171, 0.0
      %v177 = vsel %vm175, %v173, 0.0
      %v178 = vadd.f32 %v176, %v177
      %179 = vadd.xlane.f32.xlu0 %v178
      %v180 = vpop.xlane.xlu0 %179
      %v181 = vmul.f32 %v180, 0.00390625
      %v182 = vld [vmem:[%s1] sm:$0xf]
      %v183 = vld [vmem:[%s2] sm:$0xf]
      %v184 = vmul.f32 %v181, %v182
      %vm185 = vcmask 27648
      %v186 = vsel %vm185, %v184, 0.0
      %v187 = vrot.slane %v186, 4
      %v188 = vadd.f32 %v186, %v187
      %v189 = vrot.slane %v188, 2
      %v190 = vadd.f32 %v188, %v189
      %v191 = vrot.slane %v190, 1
      %v192 = vadd.f32 %v190, %v191
      %v193 = vmax.f32 %v192, 0.0
      %v194 = vmul.f32 %v193, %v183
      %v195 = vsel %vm185, %v194, 0.0
      %196 = vadd.xlane.f32.xlu0 %v195
      %v197 = vpop.xlane.xlu0 %196
      %v198 = vsub.f32 0.0, %v197
      %v199 = vmul.f32 %v198, 1.442695
      %v200 = vpow.pop %v199
      %v201 = vadd.f32 %v200, 1.0
      %v202 = vrcp.pop %v201
      %v203 = vmul.f32 1.0, %v202
      %v206 = vunpack.c.l.s4 839922192
      %v207 = vunpack.c.0.s8 %v206
      %v208 = vlaneseq
      %v209 = vshrl.u32 %v208, 7
      %v210 = vsub.s32 %v207, %v209
      %v211 = vrot.slane %v203, %v210
      %v213 = vmul.f32 %v171, %v211
      %214 = vst [vmem:[%s170] sm:$0xff] %v213
      %p215 = scmp.lt.s32.totalorder %s14, 1
      %s216 = scalar_select %p215, %s14, 1
      %s217 = smul.addr %s216, 2
      %s218 = smul.addr %s217, 4
      %s219 = scalar_lea.vmem %s3, %s218
      // Predicated region
      $region33: #{qse_layer.1} parent=31 // pred_check
        %p220 = pneg %p100
      $region34: #{qse_layer.1} parent=31 // pred_check_branch
        %222 = sbr.rel (%p220) target = $region36
      $region35: #{qse_layer.1} parent=31 // pred_region
        _
      $region36: #{qse_layer.1} parent=31 // pred_fallthru
        _
    $region32: #{qse_layer.1} parent=5 // pred_fallthru
      _
    %p223 = scmp.le.s32.totalorder 2, %s9
    // Predicated region
    $region37: #{qse_layer.1} parent=5 // pred_check
      %p224 = pneg %p223
    $region38: #{qse_layer.1} parent=5 // pred_check_branch
      %226 = sbr.rel (%p224) target = $region40
    $region39: #{qse_layer.1} parent=5 // pred_region
      %s227 = ssub.s32 %s9, 2
      // Predicated region
      $region41: #{qse_layer.1} parent=39 // pred_check
        %p228 = pneg %p106
      $region42: #{qse_layer.1} parent=39 // pred_check_branch
        %230 = sbr.rel (%p228) target = $region44
      $region43: #{qse_layer.1} parent=39 // pred_region
        %p231 = scmp.lt.s32.totalorder %s15, 1
        %s232 = scalar_select %p231, %s15, 1
        %s233 = smul.addr %s232, 2
        %s234 = smul.addr %s233, 4
        %s235 = scalar_lea.vmem %s3, %s234
      $region44: #{qse_layer.1} parent=39 // pred_fallthru
        _
    $region40: #{qse_layer.1} parent=5 // pred_fallthru
      _
  $region6: #{qse_layer.1} parent=0 // loop_footer
    %s13 = sadd.s32 1, %s9
  $region7: #{qse_layer.1} parent=0 // loop_footer_branch
    %8 = sbr.rel target = $region3
  $region8: #{qse_layer.1} parent=0 // loop_exit
    _

</llo_original>
